<compile_context>
chip_gen: v7x
topology: tpu7x:2x2x1
jax: 0.10.0
libtpu: 0.0.40
codegen_flags: <defaults>
</compile_context>

<pallas_src>
import functools
import math

import jax
import jax.numpy as jnp
from jax.experimental import pallas as pl
from jax.experimental.pallas import tpu as pltpu


def _self_attention_kernel(x_ref, wqkv_ref, bqkv_ref, o_ref,
                           k_scr, v_scr, *, scale, tq):
    """One grid step = (batch item b, query tile qi).

    x_ref    : (S, E)   bf16  — full sequence for this batch item (padded E)
    wqkv_ref : (E, 3E)  bf16  — [Wq | Wk | Wv], pre-transposed (y = x @ W)
    bqkv_ref : (1, 3E)  f32   — [bq | bk | bv]
    o_ref    : (TQ, E)  f32   — output tile for this query block
    k_scr / v_scr : (S, E) bf16 VMEM scratch — per-batch-item K/V cache.

    CORRECTNESS NOTE: the K/V caching below (@pl.when(qi == 0)) is only valid
    because the qi grid axis is declared "arbitrary" (sequential on a core)
    and the scratch buffers are per-core.  Do NOT mark qi "parallel" or
    reorder the grid axes without removing the caching.
    """
    E = x_ref.shape[-1]          # padded embed dim (multiple of 128)
    qi = pl.program_id(1)

    # ---- K / V projection: once per batch item, cached in VMEM scratch. ----
    # Two separate dots writing directly into the bf16 scratch refs: no
    # (S, 2E) f32 intermediate and no slice copies (slices are not views).
    @pl.when(qi == 0)
    def _():
        k = jnp.dot(x_ref[...], wqkv_ref[:, E:2 * E],
                    preferred_element_type=jnp.float32)
        k_scr[...] = (k + bqkv_ref[:, E:2 * E]).astype(k_scr.dtype)
        v = jnp.dot(x_ref[...], wqkv_ref[:, 2 * E:3 * E],
                    preferred_element_type=jnp.float32)
        v_scr[...] = (v + bqkv_ref[:, 2 * E:3 * E]).astype(v_scr.dtype)

    # ---- Q projection for this query tile (1/sqrt(E) folded into q). -------
    q_start = pl.multiple_of(qi * tq, tq)
    xq = x_ref[pl.ds(q_start, tq), :]                       # (TQ, E) bf16
    q = jnp.dot(xq, wqkv_ref[:, :E], preferred_element_type=jnp.float32)
    q = ((q + bqkv_ref[:, :E]) * scale).astype(jnp.bfloat16)

    # ---- scores = q @ k^T, contracting last dims (no physical transpose). --
    scores = jax.lax.dot_general(
        q, k_scr[...],
        dimension_numbers=(((1,), (1,)), ((), ())),
        preferred_element_type=jnp.float32)                 # (TQ, S) f32

    # ---- numerically stable softmax; normalization deferred past P @ V. ----
    m = jnp.max(scores, axis=-1, keepdims=True)
    p = jnp.exp(scores - m)                                  # unnormalized
    denom = jnp.sum(p, axis=-1, keepdims=True)               # (TQ, 1)

    # P_unnorm @ V on the MXU, then scale the small (TQ, E) result by the
    # per-row reciprocal (EUP slot) — TQ*E VPU muls instead of TQ*S.
    o = jnp.dot(p.astype(jnp.bfloat16), v_scr[...],
                preferred_element_type=jnp.float32)
    o_ref[...] = (o * pl.reciprocal(denom, approx=True)).astype(o_ref.dtype)


def _device_kind():
    try:
        return jax.devices()[0].device_kind.lower()
    except Exception:
        return ""


def _pick_tq(S, device_kind):
    """Query-tile size: multiple of 8 that divides S.

    v6e/v7x MXUs are 256 wide -> prefer TQ >= 256 (up to 512).
    v5e's MXU is 128 wide     -> cap at 256; larger TQ only inflates the live
    (TQ, S) f32 scores working set with no MXU benefit.
    """
    max_tq = 256 if "v5" in device_kind else 512
    for cand in (512, 256, 128, 64, 32, 16, 8):
        if cand <= max_tq and S % cand == 0:
            return cand
    return S   # fall back to a single full-sequence tile


def _vmem_limit_bytes():
    """Per-generation VMEM budget with headroom for Mosaic internal scratch."""
    phys = 64 * 1024 * 1024            # conservative default (v7x per-TC)
    try:
        phys = int(pltpu.get_tpu_info().vmem_capacity_bytes)
    except Exception:
        pass
    # v7x (64 MiB physical): ~52 MiB.  v5e/v6e (128 MiB): ~100 MiB.
    return max(32 * 1024 * 1024,
               min(phys - 12 * 1024 * 1024, 100 * 1024 * 1024))


def _const_spec(block_shape, index_map):
    """BlockSpec for blocks whose index_map is constant: a single pipeline
    buffer suffices (they are DMA'd exactly once), reclaiming one full block
    of VMEM.  Falls back gracefully on jax versions without pipeline_mode."""
    try:
        return pl.BlockSpec(block_shape, index_map,
                            pipeline_mode=pl.Buffered(1))
    except (TypeError, AttributeError):
        return pl.BlockSpec(block_shape, index_map)


def self_attention(x, wq, wk, wv, bq, bk, bv):
    """x: (B, S, E); wq/wk/wv: (E, E) pre-transposed (y = x @ W + b); b*: (1, E)."""
    B, S, E = x.shape
    scale = 1.0 / math.sqrt(float(E))        # x.size(-1) ** 0.5 (unpadded E)

    # ---- lane-dense padding of the embed dim to a multiple of 128. ---------
    E_pad = ((E + 127) // 128) * 128

    def pad_last(a):
        pad = E_pad - a.shape[-1]
        return jnp.pad(a, [(0, 0)] * (a.ndim - 1) + [(0, pad)]) if pad else a

    def pad_w(w):
        return jnp.pad(w, ((0, E_pad - E), (0, E_pad - E))) if E_pad != E else w

    x_p = pad_last(x).astype(jnp.bfloat16)                          # (B, S, E_pad)
    wqkv = jnp.concatenate([pad_w(wq), pad_w(wk), pad_w(wv)],
                           axis=1).astype(jnp.bfloat16)             # (E_pad, 3E_pad)
    bqkv = jnp.concatenate([pad_last(bq), pad_last(bk), pad_last(bv)],
                           axis=1).astype(jnp.float32)              # (1, 3E_pad)

    TQ = _pick_tq(S, _device_kind())
    grid = (B, S // TQ)

    # TODO(synk): for very large S on v7x (K/V scratch + x slab > ~24 MiB) add
    # a KV grid axis with flash-style online softmax, and a core-split of the
    # query-tile range when B == 1 so the second v7x TensorCore is not idle.
    x_spec = pl.BlockSpec((None, S, E_pad), lambda b, qi: (b, 0, 0))
    w_spec = _const_spec((E_pad, 3 * E_pad), lambda b, qi: (0, 0))
    b_spec = _const_spec((1, 3 * E_pad), lambda b, qi: (0, 0))
    o_spec = pl.BlockSpec((None, TQ, E_pad), lambda b, qi: (b, qi, 0))

    kernel = functools.partial(_self_attention_kernel, scale=scale, tq=TQ)

    out_padded = pl.pallas_call(
        kernel,
        out_shape=jax.ShapeDtypeStruct((B, S, E_pad), x.dtype),
        grid=grid,
        in_specs=[x_spec, w_spec, b_spec],
        out_specs=o_spec,
        scratch_shapes=[pltpu.VMEM((S, E_pad), jnp.bfloat16),   # K cache
                        pltpu.VMEM((S, E_pad), jnp.bfloat16)],  # V cache
        # B is parallel (megacore); qi MUST stay "arbitrary" so the per-core
        # K/V scratch caching in the kernel remains valid.
        compiler_params=pltpu.CompilerParams(
            dimension_semantics=("parallel", "arbitrary"),
            vmem_limit_bytes=_vmem_limit_bytes()),
    )(x_p, wqkv, bqkv)

    # Skip the un-pad slice (an extra full-output HBM pass) when E is already
    # lane-aligned.
    return out_padded if E == E_pad else out_padded[..., :E]


def _init_linear_params(key, embed_dim):
    """nn.Linear-style init. Returns (W_T, b): W_T is (in, out) so y = x @ W_T + b."""
    kw, kb = jax.random.split(key)
    bound = 1.0 / math.sqrt(embed_dim)
    w = jax.random.uniform(kw, (embed_dim, embed_dim), jnp.float32, -bound, bound)
    b = jax.random.uniform(kb, (1, embed_dim), jnp.float32, -bound, bound)
    return w, b


def reference_self_attention(x, wq, wk, wv, bq, bk, bv):
    q = x @ wq + bq
    k = x @ wk + bk
    v = x @ wv + bv
    scores = jax.nn.softmax((q @ jnp.swapaxes(k, -2, -1)) / math.sqrt(x.shape[-1]),
                            axis=-1)
    return scores @ v


if __name__ == "__main__":
    B, S, E = 2, 8, 32
    key = jax.random.PRNGKey(0)
    kx, kq, kk, kv = jax.random.split(key, 4)

    x = jax.random.normal(kx, (B, S, E), jnp.float32)
    wq, bq = _init_linear_params(kq, E)
    wk, bk = _init_linear_params(kk, E)
    wv, bv = _init_linear_params(kv, E)

    out = self_attention(x, wq, wk, wv, bq, bk, bv)
    out = jax.block_until_ready(out)

    ref = reference_self_attention(x, wq, wk, wv, bq, bk, bv)
    assert out.shape == (B, S, E)
    # bf16 MXU operands + approx reciprocal -> relaxed tolerance vs f32 reference.
    assert jnp.allclose(out, ref, atol=3e-2, rtol=3e-2), "mismatch vs JAX reference"

    print("KERNEL_OK")
</pallas_src>

<mosaic_0001>
module attributes {stable_mosaic.version = 11 : i64} {
  func.func @_self_attention_kernel(%arg0: i32, %arg1: i32, %arg2: memref<1x8x128xbf16, #tpu.memory_space<vmem>>, %arg3: memref<128x384xbf16, #tpu.memory_space<vmem>>, %arg4: memref<1x384xf32, #tpu.memory_space<vmem>>, %arg5: memref<1x8x128xf32, #tpu.memory_space<vmem>>, %arg6: memref<8x128xbf16, #tpu.memory_space<vmem>>, %arg7: memref<8x128xbf16, #tpu.memory_space<vmem>>) attributes {dimension_semantics = [#tpu.dimension_semantics<parallel>, #tpu.dimension_semantics<arbitrary>], iteration_bounds = array<i64: 2, 1>, scalar_prefetch = 0 : i64, scratch_operands = 2 : i64, tpu.core_type = #tpu.core_type<tc>, window_params = [{transform_indices = @transform_0, window_bounds = array<i64: 1, 8, 128>}, {pipeline_mode = #tpu.pipeline_mode<synchronous>, transform_indices = @transform_1, window_bounds = array<i64: 128, 384>}, {pipeline_mode = #tpu.pipeline_mode<synchronous>, transform_indices = @transform_2, window_bounds = array<i64: 1, 384>}, {transform_indices = @transform_3, window_bounds = array<i64: 1, 8, 128>}]} {
    %c0_i32 = arith.constant 0 : i32
    %0 = arith.cmpi eq, %arg1, %c0_i32 : i32
    %1 = arith.extui %0 : i1 to i32
    %c0_i32_0 = arith.constant 0 : i32
    %2 = arith.cmpi ne, %1, %c0_i32_0 : i32
    scf.if %2 {
      %c0_18 = arith.constant 0 : index
      %c0_19 = arith.constant 0 : index
      %c0_20 = arith.constant 0 : index
      %34 = vector.load %arg2[%c0_18, %c0_19, %c0_20] : memref<1x8x128xbf16, #tpu.memory_space<vmem>>, vector<1x8x128xbf16>
      %35 = vector.shape_cast %34 : vector<1x8x128xbf16> to vector<8x128xbf16>
      %c0_21 = arith.constant 0 : index
      %c128 = arith.constant 128 : index
      %36 = vector.load %arg3[%c0_21, %c128] : memref<128x384xbf16, #tpu.memory_space<vmem>>, vector<128x128xbf16>
      %cst_22 = arith.constant dense<0.000000e+00> : vector<8x128xf32>
      %37 = tpu.matmul %35, %36, %cst_22 {dimension_numbers = #tpu.dot_dimension_numbers<[1], [0], [0], [1], [0, 0, 1, 1], [], []>} : vector<8x128xbf16>, vector<128x128xbf16>, vector<8x128xf32> -> vector<8x128xf32>
      %c0_23 = arith.constant 0 : index
      %c128_24 = arith.constant 128 : index
      %38 = vector.load %arg4[%c0_23, %c128_24] : memref<1x384xf32, #tpu.memory_space<vmem>>, vector<1x128xf32>
      %39 = vector.broadcast %38 : vector<1x128xf32> to vector<8x128xf32>
      %40 = arith.addf %37, %39 : vector<8x128xf32>
      %41 = arith.truncf %40 : vector<8x128xf32> to vector<8x128xbf16>
      %c0_25 = arith.constant 0 : index
      %c0_26 = arith.constant 0 : index
      %42 = vector.load %arg6[%c0_25, %c0_26] : memref<8x128xbf16, #tpu.memory_space<vmem>>, vector<8x128xbf16>
      tpu.vector_store %arg6[%c0_25, %c0_26], %41 {strides = array<i32>} : memref<8x128xbf16, #tpu.memory_space<vmem>>, vector<8x128xbf16>,
      %c0_27 = arith.constant 0 : index
      %c0_28 = arith.constant 0 : index
      %c0_29 = arith.constant 0 : index
      %43 = vector.load %arg2[%c0_27, %c0_28, %c0_29] : memref<1x8x128xbf16, #tpu.memory_space<vmem>>, vector<1x8x128xbf16>
      %44 = vector.shape_cast %43 : vector<1x8x128xbf16> to vector<8x128xbf16>
      %c0_30 = arith.constant 0 : index
      %c256 = arith.constant 256 : index
      %45 = vector.load %arg3[%c0_30, %c256] : memref<128x384xbf16, #tpu.memory_space<vmem>>, vector<128x128xbf16>
      %cst_31 = arith.constant dense<0.000000e+00> : vector<8x128xf32>
      %46 = tpu.matmul %44, %45, %cst_31 {dimension_numbers = #tpu.dot_dimension_numbers<[1], [0], [0], [1], [0, 0, 1, 1], [], []>} : vector<8x128xbf16>, vector<128x128xbf16>, vector<8x128xf32> -> vector<8x128xf32>
      %c0_32 = arith.constant 0 : index
      %c256_33 = arith.constant 256 : index
      %47 = vector.load %arg4[%c0_32, %c256_33] : memref<1x384xf32, #tpu.memory_space<vmem>>, vector<1x128xf32>
      %48 = vector.broadcast %47 : vector<1x128xf32> to vector<8x128xf32>
      %49 = arith.addf %46, %48 : vector<8x128xf32>
      %50 = arith.truncf %49 : vector<8x128xf32> to vector<8x128xbf16>
      %c0_34 = arith.constant 0 : index
      %c0_35 = arith.constant 0 : index
      %51 = vector.load %arg7[%c0_34, %c0_35] : memref<8x128xbf16, #tpu.memory_space<vmem>>, vector<8x128xbf16>
      tpu.vector_store %arg7[%c0_34, %c0_35], %50 {strides = array<i32>} : memref<8x128xbf16, #tpu.memory_space<vmem>>, vector<8x128xbf16>,
    } else {
    }
    %c8_i32 = arith.constant 8 : i32
    %3 = arith.muli %arg1, %c8_i32 : i32
    %4 = tpu.assume_multiple %3, 8 : i32
    %c0 = arith.constant 0 : index
    %5 = arith.index_cast %4 : i32 to index
    %c0_1 = arith.constant 0 : index
    %6 = vector.load %arg2[%c0, %5, %c0_1] : memref<1x8x128xbf16, #tpu.memory_space<vmem>>, vector<1x8x128xbf16>
    %7 = vector.shape_cast %6 : vector<1x8x128xbf16> to vector<8x128xbf16>
    %c0_2 = arith.constant 0 : index
    %c0_3 = arith.constant 0 : index
    %8 = vector.load %arg3[%c0_2, %c0_3] : memref<128x384xbf16, #tpu.memory_space<vmem>>, vector<128x128xbf16>
    %cst = arith.constant dense<0.000000e+00> : vector<8x128xf32>
    %9 = tpu.matmul %7, %8, %cst {dimension_numbers = #tpu.dot_dimension_numbers<[1], [0], [0], [1], [0, 0, 1, 1], [], []>} : vector<8x128xbf16>, vector<128x128xbf16>, vector<8x128xf32> -> vector<8x128xf32>
    %c0_4 = arith.constant 0 : index
    %c0_5 = arith.constant 0 : index
    %10 = vector.load %arg4[%c0_4, %c0_5] : memref<1x384xf32, #tpu.memory_space<vmem>>, vector<1x128xf32>
    %11 = vector.broadcast %10 : vector<1x128xf32> to vector<8x128xf32>
    %12 = arith.addf %9, %11 : vector<8x128xf32>
    %cst_6 = arith.constant 0.176776692 : f32
    %13 = vector.broadcast %cst_6 : f32 to vector<8x128xf32>
    %14 = arith.mulf %12, %13 : vector<8x128xf32>
    %15 = arith.truncf %14 : vector<8x128xf32> to vector<8x128xbf16>
    %c0_7 = arith.constant 0 : index
    %c0_8 = arith.constant 0 : index
    %16 = vector.load %arg6[%c0_7, %c0_8] : memref<8x128xbf16, #tpu.memory_space<vmem>>, vector<8x128xbf16>
    %cst_9 = arith.constant dense<0.000000e+00> : vector<8x8xf32>
    %17 = tpu.matmul %15, %16, %cst_9 {dimension_numbers = #tpu.dot_dimension_numbers<[1], [1], [0], [0], [0, 0, 1, 0], [], []>} : vector<8x128xbf16>, vector<8x128xbf16>, vector<8x8xf32> -> vector<8x8xf32>
    %cst_10 = arith.constant dense<0xFF800000> : vector<8xf32>
    %18 = vector.multi_reduction <maximumf>, %17, %cst_10 [1] : vector<8x8xf32> to vector<8xf32>
    %19 = vector.shape_cast %18 : vector<8xf32> to vector<8x1xf32>
    %20 = vector.broadcast %19 : vector<8x1xf32> to vector<8x8xf32>
    %21 = arith.subf %17, %20 : vector<8x8xf32>
    %22 = math.exp %21 : vector<8x8xf32>
    %cst_11 = arith.constant dense<0.000000e+00> : vector<8xf32>
    %23 = vector.multi_reduction <add>, %22, %cst_11 [1] : vector<8x8xf32> to vector<8xf32>
    %24 = vector.shape_cast %23 : vector<8xf32> to vector<8x1xf32>
    %25 = arith.truncf %22 : vector<8x8xf32> to vector<8x8xbf16>
    %c0_12 = arith.constant 0 : index
    %c0_13 = arith.constant 0 : index
    %26 = vector.load %arg7[%c0_12, %c0_13] : memref<8x128xbf16, #tpu.memory_space<vmem>>, vector<8x128xbf16>
    %cst_14 = arith.constant dense<0.000000e+00> : vector<8x128xf32>
    %27 = tpu.matmul %25, %26, %cst_14 {dimension_numbers = #tpu.dot_dimension_numbers<[1], [0], [0], [1], [0, 0, 1, 1], [], []>} : vector<8x8xbf16>, vector<8x128xbf16>, vector<8x128xf32> -> vector<8x128xf32>
    %28 = tpu.reciprocal %24 {approx = true} : vector<8x1xf32> -> vector<8x1xf32>
    %29 = vector.broadcast %28 : vector<8x1xf32> to vector<8x128xf32>
    %30 = arith.mulf %27, %29 : vector<8x128xf32>
    %c0_15 = arith.constant 0 : index
    %c0_16 = arith.constant 0 : index
    %c0_17 = arith.constant 0 : index
    %31 = vector.load %arg5[%c0_15, %c0_16, %c0_17] : memref<1x8x128xf32, #tpu.memory_space<vmem>>, vector<1x8x128xf32>
    %32 = vector.shape_cast %31 : vector<1x8x128xf32> to vector<8x128xf32>
    %33 = vector.shape_cast %30 : vector<8x128xf32> to vector<1x8x128xf32>
    tpu.vector_store %arg5[%c0_15, %c0_16, %c0_17], %33 {strides = array<i32>} : memref<1x8x128xf32, #tpu.memory_space<vmem>>, vector<1x8x128xf32>,
    return
  }
  func.func @transform_0(%arg0: i32, %arg1: i32) -> (i32, i32, i32) {
    %c0_i32 = arith.constant 0 : i32
    %c0_i32_0 = arith.constant 0 : i32
    %c0_i32_1 = arith.constant 0 : i32
    return %arg0, %c0_i32, %c0_i32_0 : i32, i32, i32
  }
  func.func @transform_1(%arg0: i32, %arg1: i32) -> (i32, i32) {
    %c0_i32 = arith.constant 0 : i32
    %c0_i32_0 = arith.constant 0 : i32
    %c0_i32_1 = arith.constant 0 : i32
    return %c0_i32, %c0_i32_0 : i32, i32
  }
  func.func @transform_2(%arg0: i32, %arg1: i32) -> (i32, i32) {
    %c0_i32 = arith.constant 0 : i32
    %c0_i32_0 = arith.constant 0 : i32
    %c0_i32_1 = arith.constant 0 : i32
    return %c0_i32, %c0_i32_0 : i32, i32
  }
  func.func @transform_3(%arg0: i32, %arg1: i32) -> (i32, i32, i32) {
    %c0_i32 = arith.constant 0 : i32
    %c0_i32_0 = arith.constant 0 : i32
    return %arg0, %arg1, %c0_i32 : i32, i32, i32
  }
}

</mosaic_0001>

<llo_original>
// kernel: tpu_custom_call.1
$region0: #{tpu_custom_call.1}
  #allocation0 [shape = 'u32[]', space=smem, size = 0x4, offset = 0x4, fixed_abs, tag = 'smem constant byte address 0x4 - core index']
  #allocation1 [shape = 'u32[144,128]{1,0:T(1,128)}', space=vmem, size = 0x12000, scoped, tag = 'internal scratch']
  #allocation2 [shape = 'bf16[8,128]{1,0:T(8,128)(2,1)}', space=vmem, size = 0x800, scoped, tag = 'scratch operand']
  #allocation3 [shape = 'bf16[8,128]{1,0:T(8,128)(2,1)}', space=vmem, size = 0x800, scoped, tag = 'scratch operand']
  %s0 = inlined_call_operand.hbm [shape: bf16[2,8,128], index: 0, kind: input, shape index: {}]
  %s1 = inlined_call_operand.hbm [shape: bf16[128,384], index: 1, kind: input, shape index: {}]
  %s2 = inlined_call_operand.vmem [shape: f32[1,384], index: 2, kind: input, shape index: {}]
  %s3 = inlined_call_operand.hbm [shape: f32[2,8,128], index: 3, kind: output, shape index: {}]
  %s4 = sld [smem:[#allocation0]]
  $region57: #{tpu_custom_call.1} parent=0
    _
  %s6 = ssub.s32 1, %s4
  %s7 = scalar_select 0, %s6, %s4
  $region1: #{tpu_custom_call.1} parent=0
    #allocation4 [shape = 'u8[4096]{0}', space=vmem, size = 0x1000, scoped, tag = 'input window, operand 0']
    #allocation5 [shape = 's32[2]{0}', space=sflag, size = 0x8, scoped, tag = 'scoped memory for tpu_custom_call.1']
    #allocation6 [shape = 's32[2]{0}', space=sflag, size = 0x8, scoped, tag = 'scoped memory for tpu_custom_call.1']
    #allocation7 [shape = 'u8[98304]{0}', space=vmem, size = 0x18000, scoped, tag = 'input window, operand 1, single buffered']
    #allocation8 [shape = 's32[1]{0}', space=sflag, size = 0x4, scoped, tag = 'scoped memory for tpu_custom_call.1']
    #allocation9 [shape = 'u8[8192]{0}', space=vmem, size = 0x2000, scoped, tag = 'output window, operand 0']
    %8 = vsyncpa [#allocation5], 0
    %s9 = scalar_lea.sflag [#allocation5], 1
    %10 = vsyncpa %s9, 0
    %11 = vsyncpa [#allocation8], 0
    %12 = vsyncpa [#allocation6], 0
    %s13 = scalar_lea.sflag [#allocation6], 1
    %14 = vsyncpa %s13, 0
    loop: start=0, step=1, limit=4
    $region2: #{tpu_custom_call.1} parent=1 // loop_pre_header
      _
    $region3: #{tpu_custom_call.1} parent=1 // loop_header
      %s16 = sphi 0, %s20
      %p17 = scmp.ge.s32.totalorder %s16, 4
      %s23 = sphi 0, %s35
      %s24 = sphi 0, %s31
      %s25 = sphi 0, %s23
      %s26 = sphi 0, %s24
      %s27 = sphi 0, %s25
      %s28 = sphi 0, %s26
      %s38 = sphi 0, %s40
      %s41 = sphi 0, %s38
      %s42 = sphi 0, %s41
      %s58 = sphi 0, %s42
      %s62 = sphi 0, %s62
      %s64 = sphi 0, %s62
      %s65 = sphi 0, %s64
      %s79 = sphi 0, %s65
      %s83 = sphi 0, %s83
      %s85 = sphi 0, %s83
      %s86 = sphi 0, %s85
      %s100 = sphi 0, %s86
      %s108 = sphi 0, %s110
      %s111 = sphi 0, %s108
      %s112 = sphi 0, %s111
      %s128 = sphi 0, %s112
    $region4: #{tpu_custom_call.1} parent=1 // loop_header_branch
      %19 = sbr.rel (%p17) target = $region8
    $region5: #{tpu_custom_call.1} parent=1 // loop_body
      %s21 = ssub.s32 %s16, 1
      %s22 = ssub.s32 %s16, 2
      %s29 = sadd.s32 1, %s24
      %p30 = scmp.ge.s32.totalorder %s29, 1
      %s31 = scalar_select %p30, 0, %s29
      %s32 = sadd.s32 1, %s23
      %s33 = scalar_select %p30, %s32, %s23
      %p34 = scmp.ge.s32.totalorder %s33, 2
      %s35 = scalar_select %p34, 0, %s33
      %s36 = ssub.s32 %s23, %s35
      %p37 = scmp.eq.s32.totalorder %s36, 0
      %s39 = sadd.s32 %s38, 1
      %s40 = scalar_select %p37, %s38, %s39
      %p43 = pneg %p37
      %p44 = scmp.eq.s32.totalorder %s16, 1
      %p45 = por %p43, %p44
      %p46 = scmp.ne.s32.totalorder %s38, %s41
      %p47 = scmp.eq.s32.totalorder %s16, 0
      %p48 = por %p46, %p47
      %p49 = scmp.ne.s32.totalorder %s38, %s41
      %p50 = scmp.eq.s32.totalorder %s21, 1
      %p51 = por %p49, %p50
      %p52 = scmp.ne.s32.totalorder %s41, %s42
      %p53 = scmp.eq.s32.totalorder %s21, 0
      %p54 = por %p52, %p53
      %p55 = scmp.ne.s32.totalorder %s41, %s42
      %p56 = scmp.eq.s32.totalorder %s22, 1
      %p57 = por %p55, %p56
      %p59 = scmp.ne.s32.totalorder %s42, %s58
      %p60 = scmp.eq.s32.totalorder %s22, 0
      %p61 = por %p59, %p60
      %s63 = sadd.s32 %s62, 1
      %p66 = scmp.eq.s32.totalorder %s16, 1
      %p67 = scmp.ne.s32.totalorder %s62, %s64
      %p68 = scmp.eq.s32.totalorder %s16, 0
      %p69 = por %p67, %p68
      %p70 = scmp.ne.s32.totalorder %s62, %s64
      %p71 = scmp.eq.s32.totalorder %s21, 1
      %p72 = por %p70, %p71
      %p73 = scmp.ne.s32.totalorder %s64, %s65
      %p74 = scmp.eq.s32.totalorder %s21, 0
      %p75 = por %p73, %p74
      %p76 = scmp.ne.s32.totalorder %s64, %s65
      %p77 = scmp.eq.s32.totalorder %s22, 1
      %p78 = por %p76, %p77
      %p80 = scmp.ne.s32.totalorder %s65, %s79
      %p81 = scmp.eq.s32.totalorder %s22, 0
      %p82 = por %p80, %p81
      %s84 = sadd.s32 %s83, 1
      %p87 = scmp.eq.s32.totalorder %s16, 1
      %p88 = scmp.ne.s32.totalorder %s83, %s85
      %p89 = scmp.eq.s32.totalorder %s16, 0
      %p90 = por %p88, %p89
      %p91 = scmp.ne.s32.totalorder %s83, %s85
      %p92 = scmp.eq.s32.totalorder %s21, 1
      %p93 = por %p91, %p92
      %p94 = scmp.ne.s32.totalorder %s85, %s86
      %p95 = scmp.eq.s32.totalorder %s21, 0
      %p96 = por %p94, %p95
      %p97 = scmp.ne.s32.totalorder %s85, %s86
      %p98 = scmp.eq.s32.totalorder %s22, 1
      %p99 = por %p97, %p98
      %p101 = scmp.ne.s32.totalorder %s86, %s100
      %p102 = scmp.eq.s32.totalorder %s22, 0
      %p103 = por %p101, %p102
      %s104 = ssub.s32 %s23, %s35
      %s105 = ssub.s32 %s24, %s31
      %s106 = sor.u32 %s104, %s105
      %p107 = scmp.eq.s32.totalorder %s106, 0
      %s109 = sadd.s32 %s108, 1
      %s110 = scalar_select %p107, %s108, %s109
      %p113 = pneg %p107
      %p114 = scmp.eq.s32.totalorder %s16, 1
      %p115 = por %p113, %p114
      %p116 = scmp.ne.s32.totalorder %s108, %s111
      %p117 = scmp.eq.s32.totalorder %s16, 0
      %p118 = por %p116, %p117
      %p119 = scmp.ne.s32.totalorder %s108, %s111
      %p120 = scmp.eq.s32.totalorder %s21, 1
      %p121 = por %p119, %p120
      %p122 = scmp.ne.s32.totalorder %s111, %s112
      %p123 = scmp.eq.s32.totalorder %s21, 0
      %p124 = por %p122, %p123
      %p125 = scmp.ne.s32.totalorder %s111, %s112
      %p126 = scmp.eq.s32.totalorder %s22, 1
      %p127 = por %p125, %p126
      %p129 = scmp.ne.s32.totalorder %s112, %s128
      %p130 = scmp.eq.s32.totalorder %s22, 0
      %p131 = por %p129, %p130
      %p132 = scmp.le.s32.totalorder 1, %s16
      %p133 = scmp.lt.s32.totalorder %s16, 3
      %p134 = pnand %p132, %p133
      %p135 = pneg %p134
      // Predicated region
      $region9: #{tpu_custom_call.1} parent=5 // pred_check
        _
      $region10: #{tpu_custom_call.1} parent=5 // pred_check_branch
        %137 = sbr.rel (%p134) target = $region12
      $region11: #{tpu_custom_call.1} parent=5 // pred_region
        %s138 = ssub.s32 %s16, 1
        // Predicated region
        $region13: #{tpu_custom_call.1} parent=11 // pred_check
          %p139 = pneg %p75
        $region14: #{tpu_custom_call.1} parent=11 // pred_check_branch
          %141 = sbr.rel (%p139) target = $region16
        $region15: #{tpu_custom_call.1} parent=11 // pred_region
          %s143 = ssub.s32 3072, 3072
          %144 = vsyncadd [#allocation8], %s143
          %s145 = sshll.u32 [#allocation7], 4
          %s146 = int_to_ptr.vmem [resolvable:$true] %s145
          %151 = dma.hbm_to_vmem [thread:$0]  %s1, 3072, %s146, [#allocation8], 192, 192, 12
        $region16: #{tpu_custom_call.1} parent=11 // pred_fallthru
          _
        // Predicated region
        $region17: #{tpu_custom_call.1} parent=11 // pred_check
          %p152 = pneg %p96
        $region18: #{tpu_custom_call.1} parent=11 // pred_check_branch
          %154 = sbr.rel (%p152) target = $region20
        $region19: #{tpu_custom_call.1} parent=11 // pred_region
          _
        $region20: #{tpu_custom_call.1} parent=11 // pred_fallthru
          _
      $region12: #{tpu_custom_call.1} parent=5 // pred_fallthru
        _
      %p155 = scmp.lt.s32.totalorder %s16, 2
      // Predicated region
      $region21: #{tpu_custom_call.1} parent=5 // pred_check
        %p156 = pneg %p155
      $region22: #{tpu_custom_call.1} parent=5 // pred_check_branch
        %158 = sbr.rel (%p156) target = $region24
      $region23: #{tpu_custom_call.1} parent=5 // pred_region
        // Predicated region
        $region25: #{tpu_custom_call.1} parent=23 // pred_check
          %p159 = pneg %p48
        $region26: #{tpu_custom_call.1} parent=23 // pred_check_branch
          %161 = sbr.rel (%p159) target = $region28
        $region27: #{tpu_custom_call.1} parent=23 // pred_region
          %s162 = sand.u32 %s38, 1
          %s163 = scalar_lea.sflag [#allocation5], %s162
          %s164 = sand.u32 %s38, 1
          %s165 = smul.addr %s164, 4
          %s166 = scalar_lea.vmem [#allocation4], %s165
          %s168 = ssub.s32 64, 64
          %169 = vsyncadd %s163, %s168
          %s170 = smul.addr %s23, 64
          %s171 = scalar_lea.hbm %s0, %s170
          %s173 = sshll.u32 %s166, 4
          %s174 = int_to_ptr.vmem [resolvable:$true] %s173
          %176 = dma.hbm_to_vmem [thread:$0]  %s171, 64, %s174, %s163
        $region28: #{tpu_custom_call.1} parent=23 // pred_fallthru
          _
      $region24: #{tpu_custom_call.1} parent=5 // pred_fallthru
        _
      %p177 = scmp.le.s32.totalorder 1, %s16
      %p178 = scmp.lt.s32.totalorder %s16, 3
      %p179 = pnand %p177, %p178
      %p180 = pneg %p179
      // Predicated region
      $region29: #{tpu_custom_call.1} parent=5 // pred_check
        _
      $region30: #{tpu_custom_call.1} parent=5 // pred_check_branch
        %182 = sbr.rel (%p179) target = $region32
      $region31: #{tpu_custom_call.1} parent=5 // pred_region
        %s183 = ssub.s32 %s16, 1
        %s184 = sand.u32 %s41, 1
        %s185 = scalar_lea.sflag [#allocation5], %s184
        %s186 = sand.u32 %s41, 1
        %s187 = smul.addr %s186, 4
        %s188 = scalar_lea.vmem [#allocation4], %s187
        // Predicated region
        $region33: #{tpu_custom_call.1} parent=31 // pred_check
          %p189 = pneg %p54
        $region34: #{tpu_custom_call.1} parent=31 // pred_check_branch
          %191 = sbr.rel (%p189) target = $region36
        $region35: #{tpu_custom_call.1} parent=31 // pred_region
          %192 = dma.done %s185, 64
        $region36: #{tpu_custom_call.1} parent=31 // pred_fallthru
          _
        // Predicated region
        $region37: #{tpu_custom_call.1} parent=31 // pred_check
          %p193 = pneg %p75
        $region38: #{tpu_custom_call.1} parent=31 // pred_check_branch
          %195 = sbr.rel (%p193) target = $region40
        $region39: #{tpu_custom_call.1} parent=31 // pred_region
          %196 = dma.done [#allocation8], 3072
        $region40: #{tpu_custom_call.1} parent=31 // pred_fallthru
          _
        %s197 = sand.u32 %s41, 1
        %s198 = scalar_lea.sflag [#allocation5], %s197
        %s199 = sand.u32 %s41, 1
        %s200 = smul.addr %s199, 4
        %s201 = scalar_lea.vmem [#allocation4], %s200
        %p202 = pneg %p54
        %p203 = pneg %p51
        %p204 = pneg %p75
        %p205 = pneg %p72
        %p206 = pneg %p96
        %p207 = pneg %p93
        %p208 = pneg %p124
        %p209 = pneg %p121
        %s210 = sand.u32 %s111, 1
        %s211 = scalar_lea.sflag [#allocation6], %s210
        %s212 = sand.u32 %s111, 1
        %s213 = smul.addr %s212, 8
        %s214 = scalar_lea.vmem [#allocation9], %s213
        %p216 = scmp.eq.s32.totalorder %s26, 0
        // Predicated region
        $region41: #{tpu_custom_call.1} parent=31 // pred_check
          %p217 = pneg %p216
        $region42: #{tpu_custom_call.1} parent=31 // pred_check_branch
          %219 = sbr.rel (%p217) target = $region44
        $region43: #{tpu_custom_call.1} parent=31 // pred_region
          %v220 = vld [vmem:[%s188] sm:$0xf]
          %v221 = vld [vmem:[#allocation7 + $0x4] sm:$0xf]
          %v222 = vld [vmem:[#allocation7 + $0x10] sm:$0xf]
          %v223 = vld [vmem:[#allocation7 + $0x1c] sm:$0xf]
          %v224 = vld [vmem:[#allocation7 + $0x28] sm:$0xf]
          %v225 = vld [vmem:[#allocation7 + $0x34] sm:$0xf]
          %v226 = vld [vmem:[#allocation7 + $0x40] sm:$0xf]
          %v227 = vld [vmem:[#allocation7 + $0x4c] sm:$0xf]
          %v228 = vld [vmem:[#allocation7 + $0x58] sm:$0xf]
          %v229 = vld [vmem:[#allocation7 + $0x64] sm:$0xf]
          %v230 = vld [vmem:[#allocation7 + $0x70] sm:$0xf]
          %v231 = vld [vmem:[#allocation7 + $0x7c] sm:$0xf]
          %v232 = vld [vmem:[#allocation7 + $0x88] sm:$0xf]
          %v233 = vld [vmem:[#allocation7 + $0x94] sm:$0xf]
          %v234 = vld [vmem:[#allocation7 + $0xa0] sm:$0xf]
          %v235 = vld [vmem:[#allocation7 + $0xac] sm:$0xf]
          %v236 = vld [vmem:[#allocation7 + $0xb8] sm:$0xf]
          %v237 = vld [vmem:[%s2 + $0x1] sm:$0x1]
          %v239 = vlaneseq
          %v240 = vshrl.u32 %v239, 7
          %v241 = vsub.s32 0, %v240
          %v242 = vrot.slane %v237, %v241
          %v260 = vunpack.c.l.b16 %v221
          %v261 = vunpack.c.l.b16 %v222
          %v262 = vunpack.c.l.b16 %v223
          %v263 = vunpack.c.l.b16 %v224
          %v264 = vunpack.c.l.b16 %v225
          %v265 = vunpack.c.l.b16 %v226
          %v266 = vunpack.c.l.b16 %v227
          %v267 = vunpack.c.l.b16 %v228
          %v268 = vunpack.c.l.b16 %v229
          %v269 = vunpack.c.l.b16 %v230
          %v270 = vunpack.c.l.b16 %v231
          %v271 = vunpack.c.l.b16 %v232
          %v272 = vunpack.c.l.b16 %v233
          %v273 = vunpack.c.l.b16 %v234
          %v274 = vunpack.c.l.b16 %v235
          %v275 = vunpack.c.l.b16 %v236
          %v276 = vpack.c.b16 %v261, %v260
          %v277 = vpack.c.b16 %v263, %v262
          %v278 = vpack.c.b16 %v265, %v264
          %v279 = vpack.c.b16 %v267, %v266
          %v280 = vpack.c.b16 %v269, %v268
          %v281 = vpack.c.b16 %v271, %v270
          %v282 = vpack.c.b16 %v273, %v272
          %v283 = vpack.c.b16 %v275, %v274
          %292 = vmatprep.subr.bf16.mxu0 0
          %293 = vmatpush1.bf16.msra.mxu0 %v276
          %294 = vmatprep.subr.bf16.mxu0 0
          %295 = vmatpush1.bf16.msra.mxu0 %v277
          %296 = vmatprep.subr.bf16.mxu0 0
          %297 = vmatpush1.bf16.msra.mxu0 %v278
          %298 = vmatprep.subr.bf16.mxu0 0
          %299 = vmatpush1.bf16.msra.mxu0 %v279
          %300 = vmatprep.subr.bf16.mxu0 0
          %301 = vmatpush1.bf16.msra.mxu0 %v280
          %302 = vmatprep.subr.bf16.mxu0 0
          %303 = vmatpush1.bf16.msra.mxu0 %v281
          %304 = vmatprep.subr.bf16.mxu0 0
          %305 = vmatpush1.bf16.msra.mxu0 %v282
          %306 = vmatprep.subr.bf16.mxu0 0
          %307 = vmatpush1.bf16.msra.mxu0 %v283
          %308 = vmatprep.subr.bf16.mxu0 0
          %309 = vmatpush1.bf16.msra.mxu0 0
          %310 = vmatprep.subr.bf16.mxu0 0
          %311 = vmatpush1.bf16.msra.mxu0 0
          %312 = vmatprep.subr.bf16.mxu0 0
          %313 = vmatpush1.bf16.msra.mxu0 0
          %314 = vmatprep.subr.bf16.mxu0 0
          %315 = vmatpush1.bf16.msra.mxu0 0
          %316 = vmatprep.subr.bf16.mxu0 0
          %317 = vmatpush1.bf16.msra.mxu0 0
          %318 = vmatprep.subr.bf16.mxu0 0
          %319 = vmatpush1.bf16.msra.mxu0 0
          %320 = vmatprep.subr.bf16.mxu0 0
          %321 = vmatpush1.bf16.msra.mxu0 0
          %322 = vmatprep.subr.bf16.mxu0 0
          %323 = vmatpush1.bf16.msra.mxu0 0
          %324 = vmatprep.mubr.bf16.mxu0 0
          %325 = vmatmul.mubr.bf16.gmra.mrb[0].mxu0 %v220
          %v326 = vpop.f32.mrb[0].mxu0
          %v327 = vadd.f32 %v242, %v326
          %v328 = vpop.f32.mrb[0].mxu0
          %v329 = vpop.f32.mrb[0].mxu0
          %v330 = vpop.f32.mrb[0].mxu0
          %331 = vdwg.mxu0
          %v332 = vpack.c.bf16 %v327, %v327
          %333 = vst [vmem:[#allocation2] sm:$0xf] %v332
          %v334 = vld [vmem:[%s188] sm:$0xf]
          %v335 = vld [vmem:[#allocation7 + $0x8] sm:$0xf]
          %v336 = vld [vmem:[#allocation7 + $0x14] sm:$0xf]
          %v337 = vld [vmem:[#allocation7 + $0x20] sm:$0xf]
          %v338 = vld [vmem:[#allocation7 + $0x2c] sm:$0xf]
          %v339 = vld [vmem:[#allocation7 + $0x38] sm:$0xf]
          %v340 = vld [vmem:[#allocation7 + $0x44] sm:$0xf]
          %v341 = vld [vmem:[#allocation7 + $0x50] sm:$0xf]
          %v342 = vld [vmem:[#allocation7 + $0x5c] sm:$0xf]
          %v343 = vld [vmem:[#allocation7 + $0x68] sm:$0xf]
          %v344 = vld [vmem:[#allocation7 + $0x74] sm:$0xf]
          %v345 = vld [vmem:[#allocation7 + $0x80] sm:$0xf]
          %v346 = vld [vmem:[#allocation7 + $0x8c] sm:$0xf]
          %v347 = vld [vmem:[#allocation7 + $0x98] sm:$0xf]
          %v348 = vld [vmem:[#allocation7 + $0xa4] sm:$0xf]
          %v349 = vld [vmem:[#allocation7 + $0xb0] sm:$0xf]
          %v350 = vld [vmem:[#allocation7 + $0xbc] sm:$0xf]
          %v351 = vld [vmem:[%s2 + $0x2] sm:$0x1]
          %v353 = vlaneseq
          %v354 = vshrl.u32 %v353, 7
          %v355 = vsub.s32 0, %v354
          %v356 = vrot.slane %v351, %v355
          %v374 = vunpack.c.l.b16 %v335
          %v375 = vunpack.c.l.b16 %v336
          %v376 = vunpack.c.l.b16 %v337
          %v377 = vunpack.c.l.b16 %v338
          %v378 = vunpack.c.l.b16 %v339
          %v379 = vunpack.c.l.b16 %v340
          %v380 = vunpack.c.l.b16 %v341
          %v381 = vunpack.c.l.b16 %v342
          %v382 = vunpack.c.l.b16 %v343
          %v383 = vunpack.c.l.b16 %v344
          %v384 = vunpack.c.l.b16 %v345
          %v385 = vunpack.c.l.b16 %v346
          %v386 = vunpack.c.l.b16 %v347
          %v387 = vunpack.c.l.b16 %v348
          %v388 = vunpack.c.l.b16 %v349
          %v389 = vunpack.c.l.b16 %v350
          %v390 = vpack.c.b16 %v375, %v374
          %v391 = vpack.c.b16 %v377, %v376
          %v392 = vpack.c.b16 %v379, %v378
          %v393 = vpack.c.b16 %v381, %v380
          %v394 = vpack.c.b16 %v383, %v382
          %v395 = vpack.c.b16 %v385, %v384
          %v396 = vpack.c.b16 %v387, %v386
          %v397 = vpack.c.b16 %v389, %v388
          %406 = vmatprep.subr.bf16.mxu0 0
          %407 = vmatpush1.bf16.msra.mxu0 %v390
          %408 = vmatprep.subr.bf16.mxu0 0
          %409 = vmatpush1.bf16.msra.mxu0 %v391
          %410 = vmatprep.subr.bf16.mxu0 0
          %411 = vmatpush1.bf16.msra.mxu0 %v392
          %412 = vmatprep.subr.bf16.mxu0 0
          %413 = vmatpush1.bf16.msra.mxu0 %v393
          %414 = vmatprep.subr.bf16.mxu0 0
          %415 = vmatpush1.bf16.msra.mxu0 %v394
          %416 = vmatprep.subr.bf16.mxu0 0
          %417 = vmatpush1.bf16.msra.mxu0 %v395
          %418 = vmatprep.subr.bf16.mxu0 0
          %419 = vmatpush1.bf16.msra.mxu0 %v396
          %420 = vmatprep.subr.bf16.mxu0 0
          %421 = vmatpush1.bf16.msra.mxu0 %v397
          %422 = vmatprep.subr.bf16.mxu0 0
          %423 = vmatpush1.bf16.msra.mxu0 0
          %424 = vmatprep.subr.bf16.mxu0 0
          %425 = vmatpush1.bf16.msra.mxu0 0
          %426 = vmatprep.subr.bf16.mxu0 0
          %427 = vmatpush1.bf16.msra.mxu0 0
          %428 = vmatprep.subr.bf16.mxu0 0
          %429 = vmatpush1.bf16.msra.mxu0 0
          %430 = vmatprep.subr.bf16.mxu0 0
          %431 = vmatpush1.bf16.msra.mxu0 0
          %432 = vmatprep.subr.bf16.mxu0 0
          %433 = vmatpush1.bf16.msra.mxu0 0
          %434 = vmatprep.subr.bf16.mxu0 0
          %435 = vmatpush1.bf16.msra.mxu0 0
          %436 = vmatprep.subr.bf16.mxu0 0
          %437 = vmatpush1.bf16.msra.mxu0 0
          %438 = vmatprep.mubr.bf16.mxu0 0
          %439 = vmatmul.mubr.bf16.gmra.mrb[0].mxu0 %v334
          %v440 = vpop.f32.mrb[0].mxu0
          %v441 = vadd.f32 %v356, %v440
          %v442 = vpop.f32.mrb[0].mxu0
          %v443 = vpop.f32.mrb[0].mxu0
          %v444 = vpop.f32.mrb[0].mxu0
          %445 = vdwg.mxu0
          %v446 = vpack.c.bf16 %v441, %v441
          %447 = vst [vmem:[#allocation3] sm:$0xf] %v446
        $region44: #{tpu_custom_call.1} parent=31 // pred_fallthru
          _
        %s448 = smul.u32 %s26, 8
        %s449 = sshra.s32 %s448, 3
        %s450 = sand.u32 %s448, 7
        %s451 = smul.addr %s449, 4
        %s452 = scalar_lea.vmem %s188, %s451 [#allocation4]
        %v453 = vld [vmem:[%s452] sm:$0xf]
        %v454 = vld [vmem:[#allocation7] sm:$0xf]
        %v455 = vld [vmem:[#allocation7 + $0xc] sm:$0xf]
        %v456 = vld [vmem:[#allocation7 + $0x18] sm:$0xf]
        %v457 = vld [vmem:[#allocation7 + $0x24] sm:$0xf]
        %v458 = vld [vmem:[#allocation7 + $0x30] sm:$0xf]
        %v459 = vld [vmem:[#allocation7 + $0x3c] sm:$0xf]
        %v460 = vld [vmem:[#allocation7 + $0x48] sm:$0xf]
        %v461 = vld [vmem:[#allocation7 + $0x54] sm:$0xf]
        %v462 = vld [vmem:[#allocation7 + $0x60] sm:$0xf]
        %v463 = vld [vmem:[#allocation7 + $0x6c] sm:$0xf]
        %v464 = vld [vmem:[#allocation7 + $0x78] sm:$0xf]
        %v465 = vld [vmem:[#allocation7 + $0x84] sm:$0xf]
        %v466 = vld [vmem:[#allocation7 + $0x90] sm:$0xf]
        %v467 = vld [vmem:[#allocation7 + $0x9c] sm:$0xf]
        %v468 = vld [vmem:[#allocation7 + $0xa8] sm:$0xf]
        %v469 = vld [vmem:[#allocation7 + $0xb4] sm:$0xf]
        %v470 = vld [vmem:[%s2] sm:$0x1]
        %v472 = vlaneseq
        %v473 = vshrl.u32 %v472, 7
        %v474 = vsub.s32 0, %v473
        %v475 = vrot.slane %v470, %v474
        %v493 = vunpack.c.l.b16 %v454
        %v494 = vunpack.c.l.b16 %v455
        %v495 = vunpack.c.l.b16 %v456
        %v496 = vunpack.c.l.b16 %v457
        %v497 = vunpack.c.l.b16 %v458
        %v498 = vunpack.c.l.b16 %v459
        %v499 = vunpack.c.l.b16 %v460
        %v500 = vunpack.c.l.b16 %v461
        %v501 = vunpack.c.l.b16 %v462
        %v502 = vunpack.c.l.b16 %v463
        %v503 = vunpack.c.l.b16 %v464
        %v504 = vunpack.c.l.b16 %v465
        %v505 = vunpack.c.l.b16 %v466
        %v506 = vunpack.c.l.b16 %v467
        %v507 = vunpack.c.l.b16 %v468
        %v508 = vunpack.c.l.b16 %v469
        %v509 = vpack.c.b16 %v494, %v493
        %v510 = vpack.c.b16 %v496, %v495
        %v511 = vpack.c.b16 %v498, %v497
        %v512 = vpack.c.b16 %v500, %v499
        %v513 = vpack.c.b16 %v502, %v501
        %v514 = vpack.c.b16 %v504, %v503
        %v515 = vpack.c.b16 %v506, %v505
        %v516 = vpack.c.b16 %v508, %v507
        %525 = vmatprep.subr.bf16.mxu0 0
        %526 = vmatpush1.bf16.msra.mxu0 %v509
        %527 = vmatprep.subr.bf16.mxu0 0
        %528 = vmatpush1.bf16.msra.mxu0 %v510
        %529 = vmatprep.subr.bf16.mxu0 0
        %530 = vmatpush1.bf16.msra.mxu0 %v511
        %531 = vmatprep.subr.bf16.mxu0 0
        %532 = vmatpush1.bf16.msra.mxu0 %v512
        %533 = vmatprep.subr.bf16.mxu0 0
        %534 = vmatpush1.bf16.msra.mxu0 %v513
        %535 = vmatprep.subr.bf16.mxu0 0
        %536 = vmatpush1.bf16.msra.mxu0 %v514
        %537 = vmatprep.subr.bf16.mxu0 0
        %538 = vmatpush1.bf16.msra.mxu0 %v515
        %539 = vmatprep.subr.bf16.mxu0 0
        %540 = vmatpush1.bf16.msra.mxu0 %v516
        %541 = vmatprep.subr.bf16.mxu0 0
        %542 = vmatpush1.bf16.msra.mxu0 0
        %543 = vmatprep.subr.bf16.mxu0 0
        %544 = vmatpush1.bf16.msra.mxu0 0
        %545 = vmatprep.subr.bf16.mxu0 0
        %546 = vmatpush1.bf16.msra.mxu0 0
        %547 = vmatprep.subr.bf16.mxu0 0
        %548 = vmatpush1.bf16.msra.mxu0 0
        %549 = vmatprep.subr.bf16.mxu0 0
        %550 = vmatpush1.bf16.msra.mxu0 0
        %551 = vmatprep.subr.bf16.mxu0 0
        %552 = vmatpush1.bf16.msra.mxu0 0
        %553 = vmatprep.subr.bf16.mxu0 0
        %554 = vmatpush1.bf16.msra.mxu0 0
        %555 = vmatprep.subr.bf16.mxu0 0
        %556 = vmatpush1.bf16.msra.mxu0 0
        %557 = vmatprep.mubr.bf16.mxu0 0
        %558 = vmatmul.mubr.bf16.gmra.mrb[0].mxu0 %v453
        %v559 = vpop.f32.mrb[0].mxu0
        %v560 = vadd.f32 %v475, %v559
        %v561 = vpop.f32.mrb[0].mxu0
        %v562 = vpop.f32.mrb[0].mxu0
        %v563 = vpop.f32.mrb[0].mxu0
        %564 = vdwg.mxu0
        %v565 = vmul.f32 %v560, 0.17677669
        %v566 = vpack.c.bf16 %v565, %v565
        %v567 = vld [vmem:[#allocation2] sm:$0xf]
        %568 = vmatprep.subr.bf16.mxu0 0
        %569 = vmatpush1.bf16.xpose.msra.mxu0 %v567
        %570 = vmatprep.subr.bf16.mxu0 0
        %571 = vmatpush1.bf16.xpose.msra.mxu0 0
        %572 = vmatprep.subr.bf16.mxu0 0
        %573 = vmatpush1.bf16.xpose.msra.mxu0 0
        %574 = vmatprep.subr.bf16.mxu0 0
        %575 = vmatpush1.bf16.xpose.msra.mxu0 0
        %576 = vmatprep.subr.bf16.mxu0 0
        %577 = vmatpush1.bf16.xpose.msra.mxu0 0
        %578 = vmatprep.subr.bf16.mxu0 0
        %579 = vmatpush1.bf16.xpose.msra.mxu0 0
        %580 = vmatprep.subr.bf16.mxu0 0
        %581 = vmatpush1.bf16.xpose.msra.mxu0 0
        %582 = vmatprep.subr.bf16.mxu0 0
        %583 = vmatpush1.bf16.xpose.msra.mxu0 0
        %584 = vmatprep.subr.bf16.mxu0 0
        %585 = vmatpush1.bf16.xpose.msra.mxu0 0
        %586 = vmatprep.subr.bf16.mxu0 0
        %587 = vmatpush1.bf16.xpose.msra.mxu0 0
        %588 = vmatprep.subr.bf16.mxu0 0
        %589 = vmatpush1.bf16.xpose.msra.mxu0 0
        %590 = vmatprep.subr.bf16.mxu0 0
        %591 = vmatpush1.bf16.xpose.msra.mxu0 0
        %592 = vmatprep.subr.bf16.mxu0 0
        %593 = vmatpush1.bf16.xpose.msra.mxu0 0
        %594 = vmatprep.subr.bf16.mxu0 0
        %595 = vmatpush1.bf16.xpose.msra.mxu0 0
        %596 = vmatprep.subr.bf16.mxu0 0
        %597 = vmatpush1.bf16.xpose.msra.mxu0 0
        %598 = vmatprep.subr.bf16.mxu0 0
        %599 = vmatpush1.bf16.xpose.msra.mxu0 0
        %600 = vmatprep.mubr.bf16.mxu0 0
        %601 = vmatmul.mubr.bf16.gmra.mrb[0].mxu0 %v566
        %v602 = vpop.f32.mrb[0].mxu0
        %v603 = vadd.f32 0.0, %v602
        %v604 = vpop.f32.mrb[0].mxu0
        %v605 = vpop.f32.mrb[0].mxu0
        %v606 = vpop.f32.mrb[0].mxu0
        %607 = vdwg.mxu0
        %vm608 = vcmask 64512
        %v609 = vsel %vm608, %v603, -inf
        %610 = vmax.xlane.f32.xlu0 %v609
        %v611 = vpop.xlane.xlu0 %610
        %v612 = vsub.f32 %v603, %v611
        %v613 = vmul.f32 %v612, 1.442695
        %v614 = vpow.pop %v613
        %v615 = vsel %vm608, %v614, 0.0
        %616 = vadd.xlane.f32.xlu0 %v615
        %v617 = vpop.xlane.xlu0 %616
        %v618 = vpack.c.bf16 %v614, %v614
        %v619 = vld [vmem:[#allocation3] sm:$0xf]
        %v621 = vsel %vm608, %v618, 0
        %vm623 = vcmask 1043456
        %v625 = vsel %vm623, %v619, 0
        %627 = vmatprep.subr.bf16.mxu0 0
        %628 = vmatpush1.bf16.msra.mxu0 %v625
        %629 = vmatprep.subr.bf16.mxu0 0
        %630 = vmatpush1.bf16.msra.mxu0 0
        %631 = vmatprep.subr.bf16.mxu0 0
        %632 = vmatpush1.bf16.msra.mxu0 0
        %633 = vmatprep.subr.bf16.mxu0 0
        %634 = vmatpush1.bf16.msra.mxu0 0
        %635 = vmatprep.subr.bf16.mxu0 0
        %636 = vmatpush1.bf16.msra.mxu0 0
        %637 = vmatprep.subr.bf16.mxu0 0
        %638 = vmatpush1.bf16.msra.mxu0 0
        %639 = vmatprep.subr.bf16.mxu0 0
        %640 = vmatpush1.bf16.msra.mxu0 0
        %641 = vmatprep.subr.bf16.mxu0 0
        %642 = vmatpush1.bf16.msra.mxu0 0
        %643 = vmatprep.subr.bf16.mxu0 0
        %644 = vmatpush1.bf16.msra.mxu0 0
        %645 = vmatprep.subr.bf16.mxu0 0
        %646 = vmatpush1.bf16.msra.mxu0 0
        %647 = vmatprep.subr.bf16.mxu0 0
        %648 = vmatpush1.bf16.msra.mxu0 0
        %649 = vmatprep.subr.bf16.mxu0 0
        %650 = vmatpush1.bf16.msra.mxu0 0
        %651 = vmatprep.subr.bf16.mxu0 0
        %652 = vmatpush1.bf16.msra.mxu0 0
        %653 = vmatprep.subr.bf16.mxu0 0
        %654 = vmatpush1.bf16.msra.mxu0 0
        %655 = vmatprep.subr.bf16.mxu0 0
        %656 = vmatpush1.bf16.msra.mxu0 0
        %657 = vmatprep.subr.bf16.mxu0 0
        %658 = vmatpush1.bf16.msra.mxu0 0
        %659 = vmatprep.mubr.bf16.mxu0 0
        %660 = vmatmul.mubr.bf16.gmra.mrb[0].mxu0 %v621
        %v661 = vpop.f32.mrb[0].mxu0
        %v662 = vadd.f32 0.0, %v661
        %v663 = vpop.f32.mrb[0].mxu0
        %v664 = vpop.f32.mrb[0].mxu0
        %v665 = vpop.f32.mrb[0].mxu0
        %666 = vdwg.mxu0
        %v667 = vrcp.pop %v617
        %v668 = vmul.f32 %v662, %v667
        %669 = vst [vmem:[%s214] sm:$0xff] %v668
        %s670 = sand.u32 %s111, 1
        %s671 = scalar_lea.sflag [#allocation6], %s670
        %s672 = sand.u32 %s111, 1
        %s673 = smul.addr %s672, 8
        %s674 = scalar_lea.vmem [#allocation9], %s673
        // Predicated region
        $region45: #{tpu_custom_call.1} parent=31 // pred_check
          %p675 = pneg %p121
        $region46: #{tpu_custom_call.1} parent=31 // pred_check_branch
          %677 = sbr.rel (%p675) target = $region48
        $region47: #{tpu_custom_call.1} parent=31 // pred_region
          %s679 = ssub.s32 128, 128
          %680 = vsyncadd %s671, %s679
          %s681 = sadd.s32 %s26, %s25
          %s682 = smul.addr %s681, 128
          %s683 = scalar_lea.hbm %s3, %s682
          %s685 = sshll.u32 %s674, 4
          %s686 = int_to_ptr.vmem [resolvable:$true] %s685
          %688 = dma.vmem_to_hbm [thread:$0]  %s686, 128, %s683, %s671
        $region48: #{tpu_custom_call.1} parent=31 // pred_fallthru
          _
      $region32: #{tpu_custom_call.1} parent=5 // pred_fallthru
        _
      %p689 = scmp.le.s32.totalorder 2, %s16
      // Predicated region
      $region49: #{tpu_custom_call.1} parent=5 // pred_check
        %p690 = pneg %p689
      $region50: #{tpu_custom_call.1} parent=5 // pred_check_branch
        %692 = sbr.rel (%p690) target = $region52
      $region51: #{tpu_custom_call.1} parent=5 // pred_region
        %s693 = ssub.s32 %s16, 2
        // Predicated region
        $region53: #{tpu_custom_call.1} parent=51 // pred_check
          %p694 = pneg %p127
        $region54: #{tpu_custom_call.1} parent=51 // pred_check_branch
          %696 = sbr.rel (%p694) target = $region56
        $region55: #{tpu_custom_call.1} parent=51 // pred_region
          %s697 = sand.u32 %s112, 1
          %s698 = scalar_lea.sflag [#allocation6], %s697
          %s699 = sand.u32 %s112, 1
          %s700 = smul.addr %s699, 8
          %s701 = scalar_lea.vmem [#allocation9], %s700
          %702 = dma.done %s698, 128
        $region56: #{tpu_custom_call.1} parent=51 // pred_fallthru
          _
      $region52: #{tpu_custom_call.1} parent=5 // pred_fallthru
        _
    $region6: #{tpu_custom_call.1} parent=1 // loop_footer
      %s20 = sadd.s32 1, %s16
    $region7: #{tpu_custom_call.1} parent=1 // loop_footer_branch
      %15 = sbr.rel target = $region3
    $region8: #{tpu_custom_call.1} parent=1 // loop_exit
      _
    %703 = vsyncpa [#allocation5], 1
    %s704 = scalar_lea.sflag [#allocation5], 1
    %705 = vsyncpa %s704, 1
    %706 = vsyncpa [#allocation8], 1
    %707 = vsyncpa [#allocation6], 1
    %s708 = scalar_lea.sflag [#allocation6], 1
    %709 = vsyncpa %s708, 1

</llo_original>
